<compile_context>
chip_gen: v5e
topology: v5e:2x2
jax: 0.10.0
libtpu: 0.0.40
codegen_flags: <defaults>
</compile_context>

<pallas_src>
import jax
import jax.numpy as jnp
from jax.experimental import pallas as pl
from jax.experimental.pallas import tpu as pltpu


LANE_CHUNK = 128          # lanes processed per inner-loop chunk (one vreg width)
MAX_CHUNKS_PER_BLOCK = 16  # <= 2048 lanes per grid step
VMEM_BUDGET_BYTES = 8 << 20  # double-buffered in+out blocks per grid step


def _fused_conv3x3_kernel(x_ref, w_ref, b_ref, o_ref):
    # x_ref: (H, W, L) f32 VMEM block, batch on lanes (L a multiple of 128).
    # w_ref: (9,) f32 SMEM (fused 3x3 taps, row-major).
    # b_ref: (1,) f32 SMEM (fused bias).
    # o_ref: (Ho, Wo, L) f32 VMEM block.
    Ho, Wo, L = o_ref.shape
    w = [w_ref[k] for k in range(9)]   # scalar SMEM reads, hoisted
    bias = b_ref[0]

    # Walk the big lane block in 128-lane chunks so vreg pressure stays at the
    # level of a 128-lane kernel (one (Ho, Wo, 128) accumulator live at a time).
    for c in range(L // LANE_CHUNK):
        lo = c * LANE_CHUNK
        acc = None
        for j in range(3):
            # One W(sublane)-shifted slab per j; its three H taps are plain
            # major-axis offsets into the same slab (register selection).
            slab = x_ref[:, j:j + Wo, lo:lo + LANE_CHUNK]        # (H, Wo, 128)
            for i in range(3):
                term = w[3 * i + j] * slab[i:i + Ho]
                acc = term if acc is None else acc + term
        # Full 128-lane store; Wo=14 on sublanes may use masked vst — minor.
        o_ref[:, :, lo:lo + LANE_CHUNK] = acc + bias


def _pick_lane_block(n, h, w, ho, wo):
    """Returns (lane_block, grid_steps) for a batch of n images."""
    n_chunks = pl.cdiv(n, LANE_CHUNK)
    # Double-buffered input + output block bytes per 128-lane chunk.
    per_chunk = 2 * (h * w + ho * wo) * 4 * LANE_CHUNK
    max_chunks = max(1, min(MAX_CHUNKS_PER_BLOCK, VMEM_BUDGET_BYTES // per_chunk))
    # Keep >= 2 grid steps when there is enough work (v7x: 2 TCs share the grid).
    min_steps = 2 if n_chunks >= 2 else 1
    steps = max(min_steps, pl.cdiv(n_chunks, max_chunks))
    chunks_per_block = pl.cdiv(n_chunks, steps)
    return chunks_per_block * LANE_CHUNK, steps


def my_model3_forward(x_nchw, w1, b1, w2, b2):
    """x_nchw: (N, 1, H, W) f32; w*: (1,1,2,2); b*: (1,) -> (N, (H-2)*(W-2))."""
    N, C, H, W = x_nchw.shape
    assert C == 1, "MyModel3 uses single-channel convs"
    Ho, Wo = H - 2, W - 2

    # ---- host-side fusion of conv1∘conv2 into one exact 3x3 conv ----------
    w1m = w1.reshape(2, 2).astype(jnp.float32)
    w2m = w2.reshape(2, 2).astype(jnp.float32)
    w_fused = jnp.zeros((3, 3), jnp.float32)
    for c in range(2):
        for d in range(2):
            # w_fused[c+a, d+b] += w2[c,d] * w1[a,b]
            w_fused = w_fused.at[c:c + 2, d:d + 2].add(w2m[c, d] * w1m)
    b_fused = (b2.reshape(-1) + b1.reshape(-1) * jnp.sum(w2m)).astype(jnp.float32)

    # ---- batch-on-lanes layout (transpose + lane pad fuse into one XLA pass)
    lane_block, steps = _pick_lane_block(N, H, W, Ho, Wo)
    Np = steps * lane_block
    xt = jnp.transpose(x_nchw[:, 0], (1, 2, 0))             # (H, W, N)
    if Np != N:
        xt = jnp.pad(xt, ((0, 0), (0, 0), (0, Np - N)))     # (H, W, Np)

    smem_spec = pl.BlockSpec(memory_space=pltpu.MemorySpace.SMEM)

    out_t = pl.pallas_call(
        _fused_conv3x3_kernel,
        out_shape=jax.ShapeDtypeStruct((Ho, Wo, Np), jnp.float32),
        grid_spec=pl.GridSpec(
            grid=(steps,),
            in_specs=[
                pl.BlockSpec((H, W, lane_block), lambda n: (0, 0, n)),
                smem_spec,   # fused weights (9,)
                smem_spec,   # fused bias (1,)
            ],
            out_specs=pl.BlockSpec((Ho, Wo, lane_block), lambda n: (0, 0, n)),
        ),
        compiler_params=pltpu.CompilerParams(
            dimension_semantics=("parallel",)),
    )(xt, w_fused.reshape(-1), b_fused)

    # Layout plumbing back to PyTorch's flatten(x, 1) layout (see TODO above).
    out = jnp.transpose(out_t[:, :, :N], (2, 0, 1)).reshape(N, Ho * Wo)
    return out


def _ref_forward(x_nchw, w1, b1, w2, b2):
    """Pure-JAX reference (two sequential lax convs) for correctness check."""
    dn = ("NCHW", "OIHW", "NCHW")
    y = jax.lax.conv_general_dilated(x_nchw, w1, (1, 1), "VALID",
                                     dimension_numbers=dn) + b1.reshape(1, -1, 1, 1)
    y = jax.lax.conv_general_dilated(y, w2, (1, 1), "VALID",
                                     dimension_numbers=dn) + b2.reshape(1, -1, 1, 1)
    return y.reshape(y.shape[0], -1)


if __name__ == "__main__":
    key = jax.random.PRNGKey(0)
    kx, kw1, kb1, kw2, kb2 = jax.random.split(key, 5)

    N, C, H, W = 2, 1, 16, 16
    x = jax.random.normal(kx, (N, C, H, W), dtype=jnp.float32)

    # nn.Conv2d(1, 1, (2,2)) param shapes; uniform(-1/sqrt(fan_in), +) init.
    bound = 0.5
    w1 = jax.random.uniform(kw1, (1, 1, 2, 2), jnp.float32, -bound, bound)
    b1 = jax.random.uniform(kb1, (1,), jnp.float32, -bound, bound)
    w2 = jax.random.uniform(kw2, (1, 1, 2, 2), jnp.float32, -bound, bound)
    b2 = jax.random.uniform(kb2, (1,), jnp.float32, -bound, bound)

    fwd = jax.jit(my_model3_forward)
    out = jax.block_until_ready(fwd(x, w1, b1, w2, b2))

    ref = _ref_forward(x, w1, b1, w2, b2)
    assert out.shape == (N, (H - 2) * (W - 2)), out.shape
    assert jnp.allclose(out, ref, atol=1e-4, rtol=1e-4), "mismatch vs reference"

    print("KERNEL_OK")
</pallas_src>

<mosaic_0001>
module attributes {stable_mosaic.version = 11 : i64} {
  func.func @_fused_conv3x3_kernel(%arg0: i32, %arg1: memref<16x16x128xf32, #tpu.memory_space<vmem>>, %arg2: memref<9xf32, #tpu.memory_space<smem>>, %arg3: memref<1xf32, #tpu.memory_space<smem>>, %arg4: memref<14x14x128xf32, #tpu.memory_space<vmem>>) attributes {dimension_semantics = [#tpu.dimension_semantics<parallel>], iteration_bounds = array<i64: 1>, scalar_prefetch = 0 : i64, scratch_operands = 0 : i64, tpu.core_type = #tpu.core_type<tc>, window_params = [{transform_indices = @transform_0, window_bounds = array<i64: 16, 16, 128>}, {transform_indices = @transform_1, window_bounds = array<i64: 9>}, {transform_indices = @transform_2, window_bounds = array<i64: 1>}, {transform_indices = @transform_3, window_bounds = array<i64: 14, 14, 128>}]} {
    %c0 = arith.constant 0 : index
    %0 = memref.load %arg2[%c0] : memref<9xf32, #tpu.memory_space<smem>>
    %c1 = arith.constant 1 : index
    %1 = memref.load %arg2[%c1] : memref<9xf32, #tpu.memory_space<smem>>
    %c2 = arith.constant 2 : index
    %2 = memref.load %arg2[%c2] : memref<9xf32, #tpu.memory_space<smem>>
    %c3 = arith.constant 3 : index
    %3 = memref.load %arg2[%c3] : memref<9xf32, #tpu.memory_space<smem>>
    %c4 = arith.constant 4 : index
    %4 = memref.load %arg2[%c4] : memref<9xf32, #tpu.memory_space<smem>>
    %c5 = arith.constant 5 : index
    %5 = memref.load %arg2[%c5] : memref<9xf32, #tpu.memory_space<smem>>
    %c6 = arith.constant 6 : index
    %6 = memref.load %arg2[%c6] : memref<9xf32, #tpu.memory_space<smem>>
    %c7 = arith.constant 7 : index
    %7 = memref.load %arg2[%c7] : memref<9xf32, #tpu.memory_space<smem>>
    %c8 = arith.constant 8 : index
    %8 = memref.load %arg2[%c8] : memref<9xf32, #tpu.memory_space<smem>>
    %c0_0 = arith.constant 0 : index
    %9 = memref.load %arg3[%c0_0] : memref<1xf32, #tpu.memory_space<smem>>
    %c0_1 = arith.constant 0 : index
    %c0_2 = arith.constant 0 : index
    %c0_3 = arith.constant 0 : index
    %10 = vector.load %arg1[%c0_1, %c0_2, %c0_3] : memref<16x16x128xf32, #tpu.memory_space<vmem>>, vector<16x14x128xf32>
    %11 = vector.extract_strided_slice %10 {offsets = [0, 0, 0], sizes = [14, 14, 128], strides = [1, 1, 1]} : vector<16x14x128xf32> to vector<14x14x128xf32>
    %12 = vector.broadcast %0 : f32 to vector<14x14x128xf32>
    %13 = arith.mulf %12, %11 : vector<14x14x128xf32>
    %14 = vector.extract_strided_slice %10 {offsets = [1, 0, 0], sizes = [14, 14, 128], strides = [1, 1, 1]} : vector<16x14x128xf32> to vector<14x14x128xf32>
    %15 = vector.broadcast %3 : f32 to vector<14x14x128xf32>
    %16 = arith.mulf %15, %14 : vector<14x14x128xf32>
    %17 = arith.addf %13, %16 : vector<14x14x128xf32>
    %18 = vector.extract_strided_slice %10 {offsets = [2, 0, 0], sizes = [14, 14, 128], strides = [1, 1, 1]} : vector<16x14x128xf32> to vector<14x14x128xf32>
    %19 = vector.broadcast %6 : f32 to vector<14x14x128xf32>
    %20 = arith.mulf %19, %18 : vector<14x14x128xf32>
    %21 = arith.addf %17, %20 : vector<14x14x128xf32>
    %c0_4 = arith.constant 0 : index
    %c1_5 = arith.constant 1 : index
    %c0_6 = arith.constant 0 : index
    %22 = vector.load %arg1[%c0_4, %c1_5, %c0_6] : memref<16x16x128xf32, #tpu.memory_space<vmem>>, vector<16x14x128xf32>
    %23 = vector.extract_strided_slice %22 {offsets = [0, 0, 0], sizes = [14, 14, 128], strides = [1, 1, 1]} : vector<16x14x128xf32> to vector<14x14x128xf32>
    %24 = vector.broadcast %1 : f32 to vector<14x14x128xf32>
    %25 = arith.mulf %24, %23 : vector<14x14x128xf32>
    %26 = arith.addf %21, %25 : vector<14x14x128xf32>
    %27 = vector.extract_strided_slice %22 {offsets = [1, 0, 0], sizes = [14, 14, 128], strides = [1, 1, 1]} : vector<16x14x128xf32> to vector<14x14x128xf32>
    %28 = vector.broadcast %4 : f32 to vector<14x14x128xf32>
    %29 = arith.mulf %28, %27 : vector<14x14x128xf32>
    %30 = arith.addf %26, %29 : vector<14x14x128xf32>
    %31 = vector.extract_strided_slice %22 {offsets = [2, 0, 0], sizes = [14, 14, 128], strides = [1, 1, 1]} : vector<16x14x128xf32> to vector<14x14x128xf32>
    %32 = vector.broadcast %7 : f32 to vector<14x14x128xf32>
    %33 = arith.mulf %32, %31 : vector<14x14x128xf32>
    %34 = arith.addf %30, %33 : vector<14x14x128xf32>
    %c0_7 = arith.constant 0 : index
    %c2_8 = arith.constant 2 : index
    %c0_9 = arith.constant 0 : index
    %35 = vector.load %arg1[%c0_7, %c2_8, %c0_9] : memref<16x16x128xf32, #tpu.memory_space<vmem>>, vector<16x14x128xf32>
    %36 = vector.extract_strided_slice %35 {offsets = [0, 0, 0], sizes = [14, 14, 128], strides = [1, 1, 1]} : vector<16x14x128xf32> to vector<14x14x128xf32>
    %37 = vector.broadcast %2 : f32 to vector<14x14x128xf32>
    %38 = arith.mulf %37, %36 : vector<14x14x128xf32>
    %39 = arith.addf %34, %38 : vector<14x14x128xf32>
    %40 = vector.extract_strided_slice %35 {offsets = [1, 0, 0], sizes = [14, 14, 128], strides = [1, 1, 1]} : vector<16x14x128xf32> to vector<14x14x128xf32>
    %41 = vector.broadcast %5 : f32 to vector<14x14x128xf32>
    %42 = arith.mulf %41, %40 : vector<14x14x128xf32>
    %43 = arith.addf %39, %42 : vector<14x14x128xf32>
    %44 = vector.extract_strided_slice %35 {offsets = [2, 0, 0], sizes = [14, 14, 128], strides = [1, 1, 1]} : vector<16x14x128xf32> to vector<14x14x128xf32>
    %45 = vector.broadcast %8 : f32 to vector<14x14x128xf32>
    %46 = arith.mulf %45, %44 : vector<14x14x128xf32>
    %47 = arith.addf %43, %46 : vector<14x14x128xf32>
    %48 = vector.broadcast %9 : f32 to vector<14x14x128xf32>
    %49 = arith.addf %47, %48 : vector<14x14x128xf32>
    %c0_10 = arith.constant 0 : index
    %c0_11 = arith.constant 0 : index
    %c0_12 = arith.constant 0 : index
    %50 = vector.load %arg4[%c0_10, %c0_11, %c0_12] : memref<14x14x128xf32, #tpu.memory_space<vmem>>, vector<14x14x128xf32>
    tpu.vector_store %arg4[%c0_10, %c0_11, %c0_12], %49 {strides = array<i32>} : memref<14x14x128xf32, #tpu.memory_space<vmem>>, vector<14x14x128xf32>,
    return
  }
  func.func @transform_0(%arg0: i32) -> (i32, i32, i32) {
    %c0_i32 = arith.constant 0 : i32
    %c0_i32_0 = arith.constant 0 : i32
    %c0_i32_1 = arith.constant 0 : i32
    return %c0_i32, %c0_i32_0, %arg0 : i32, i32, i32
  }
  func.func @transform_1(%arg0: i32) -> i32 {
    %c0_i32 = arith.constant 0 : i32
    %c0_i32_0 = arith.constant 0 : i32
    return %c0_i32 : i32
  }
  func.func @transform_2(%arg0: i32) -> i32 {
    %c0_i32 = arith.constant 0 : i32
    %c0_i32_0 = arith.constant 0 : i32
    return %c0_i32 : i32
  }
  func.func @transform_3(%arg0: i32) -> (i32, i32, i32) {
    %c0_i32 = arith.constant 0 : i32
    %c0_i32_0 = arith.constant 0 : i32
    %c0_i32_1 = arith.constant 0 : i32
    return %c0_i32, %c0_i32_0, %arg0 : i32, i32, i32
  }
}

</mosaic_0001>

<llo_original>
// kernel: my_model3_forward.1
$region0: #{my_model3_forward.1}
  #allocation0 [shape = 'u32[]', space=smem, size = 0x4, offset = 0x4, fixed_abs, tag = 'smem constant byte address 0x4 - core index']
  #allocation1 [shape = 'u32[72,128]{1,0:T(1,128)}', space=vmem, size = 0x9000, scoped, tag = 'internal scratch']
  #allocation2 [shape = 'f32[1]{0:T(128)S(6)}', space=smem, size = 0x200, scoped, tag = 'scoped memory for my_model3_forward.1']
  %s0 = inlined_call_operand.vmem [shape: f32[16,16,128], index: 0, kind: input, shape index: {}]
  %s1 = inlined_call_operand.vmem [shape: f32[9], index: 1, kind: input, shape index: {}]
  %s2 = inlined_call_operand.<no memory space> [shape: f32[1], index: 2, kind: input, shape index: {}]
  %s3 = inlined_call_operand.vmem [shape: f32[14,14,128], index: 3, kind: output, shape index: {}]
  %s4 = sld [smem:[#allocation0]]
  $region26: #{my_model3_forward.1} parent=0
    _
  %s6 = ssub.s32 1, %s4
  %s7 = scalar_select 0, %s6, %s4
  %8 = sst [smem:[#allocation2]] %s2
  $region1: #{my_model3_forward.1} parent=0
    #allocation3 [shape = 'u8[512]{0}', space=smem, size = 0x200, scoped, tag = 'input window, operand 1, single buffered']
    #allocation4 [shape = 's32[1]{0}', space=sflag, size = 0x4, scoped, tag = 'scoped memory for my_model3_forward.1']
    %9 = vsyncpa [#allocation4], 0
    // Predicated region
    $region2: #{my_model3_forward.1} parent=1 // pred_check
      _
    $region3: #{my_model3_forward.1} parent=1 // pred_check_branch
      %11 = sbr.rel (0) target = $region5
    $region4: #{my_model3_forward.1} parent=1 // pred_region
      _
    $region5: #{my_model3_forward.1} parent=1 // pred_fallthru
      _
    // Predicated region
    $region6: #{my_model3_forward.1} parent=1 // pred_check
      _
    $region7: #{my_model3_forward.1} parent=1 // pred_check_branch
      %13 = sbr.rel (0) target = $region9
    $region8: #{my_model3_forward.1} parent=1 // pred_region
      %15 = vsyncadd [#allocation4], 0
      %s17 = sshll.u32 %s1, 4
      %s18 = int_to_ptr.vmem [resolvable:$true] %s17
      %20 = dma.vmem_to_smem %s18, 16, [#allocation3], [#allocation4]
    $region9: #{my_model3_forward.1} parent=1 // pred_fallthru
      _
    // Predicated region
    $region10: #{my_model3_forward.1} parent=1 // pred_check
      _
    $region11: #{my_model3_forward.1} parent=1 // pred_check_branch
      %22 = sbr.rel (0) target = $region13
    $region12: #{my_model3_forward.1} parent=1 // pred_region
      _
    $region13: #{my_model3_forward.1} parent=1 // pred_fallthru
      _
    // Predicated region
    $region14: #{my_model3_forward.1} parent=1 // pred_check
      _
    $region15: #{my_model3_forward.1} parent=1 // pred_check_branch
      %24 = sbr.rel (0) target = $region17
    $region16: #{my_model3_forward.1} parent=1 // pred_region
      %26 = dma.done [#allocation4], 16
    $region17: #{my_model3_forward.1} parent=1 // pred_fallthru
      _
    %27 = sfence
    %s28 = sld [smem:[#allocation3]]
    %s29 = sld [smem:[#allocation3 + $0x1]]
    %s30 = sld [smem:[#allocation3 + $0x2]]
    %s31 = sld [smem:[#allocation3 + $0x3]]
    %s32 = sld [smem:[#allocation3 + $0x4]]
    %s33 = sld [smem:[#allocation3 + $0x5]]
    %s34 = sld [smem:[#allocation3 + $0x6]]
    %s35 = sld [smem:[#allocation3 + $0x7]]
    %s36 = sld [smem:[#allocation3 + $0x8]]
    %s37 = sld [smem:[#allocation2]]
    %v38 = vld [vmem:[%s0] sm:$0xff]
    %v39 = vld [vmem:[%s0 + $0x8] sm:$0x3f]
    %v40 = vld [vmem:[%s0 + $0x10] sm:$0xff]
    %v41 = vld [vmem:[%s0 + $0x18] sm:$0x3f]
    %v42 = vld [vmem:[%s0 + $0x20] sm:$0xff]
    %v43 = vld [vmem:[%s0 + $0x28] sm:$0x3f]
    %v44 = vld [vmem:[%s0 + $0x30] sm:$0xff]
    %v45 = vld [vmem:[%s0 + $0x38] sm:$0x3f]
    %v46 = vld [vmem:[%s0 + $0x40] sm:$0xff]
    %v47 = vld [vmem:[%s0 + $0x48] sm:$0x3f]
    %v48 = vld [vmem:[%s0 + $0x50] sm:$0xff]
    %v49 = vld [vmem:[%s0 + $0x58] sm:$0x3f]
    %v50 = vld [vmem:[%s0 + $0x60] sm:$0xff]
    %v51 = vld [vmem:[%s0 + $0x68] sm:$0x3f]
    %v52 = vld [vmem:[%s0 + $0x70] sm:$0xff]
    %v53 = vld [vmem:[%s0 + $0x78] sm:$0x3f]
    %v54 = vld [vmem:[%s0 + $0x80] sm:$0xff]
    %v55 = vld [vmem:[%s0 + $0x88] sm:$0x3f]
    %v56 = vld [vmem:[%s0 + $0x90] sm:$0xff]
    %v57 = vld [vmem:[%s0 + $0x98] sm:$0x3f]
    %v58 = vld [vmem:[%s0 + $0xa0] sm:$0xff]
    %v59 = vld [vmem:[%s0 + $0xa8] sm:$0x3f]
    %v60 = vld [vmem:[%s0 + $0xb0] sm:$0xff]
    %v61 = vld [vmem:[%s0 + $0xb8] sm:$0x3f]
    %v62 = vld [vmem:[%s0 + $0xc0] sm:$0xff]
    %v63 = vld [vmem:[%s0 + $0xc8] sm:$0x3f]
    %v64 = vld [vmem:[%s0 + $0xd0] sm:$0xff]
    %v65 = vld [vmem:[%s0 + $0xd8] sm:$0x3f]
    %v66 = vld [vmem:[%s0 + $0xe0] sm:$0xff]
    %v67 = vld [vmem:[%s0 + $0xe8] sm:$0x3f]
    %v68 = vld [vmem:[%s0 + $0xf0] sm:$0xff]
    %v69 = vld [vmem:[%s0 + $0xf8] sm:$0x3f]
    %v70 = vstv %s28
    %v71 = vmul.f32 %v70, %v38
    %v72 = vmul.f32 %v70, %v39
    %v73 = vmul.f32 %v70, %v40
    %v74 = vmul.f32 %v70, %v41
    %v75 = vmul.f32 %v70, %v42
    %v76 = vmul.f32 %v70, %v43
    %v77 = vmul.f32 %v70, %v44
    %v78 = vmul.f32 %v70, %v45
    %v79 = vmul.f32 %v70, %v46
    %v80 = vmul.f32 %v70, %v47
    %v81 = vmul.f32 %v70, %v48
    %v82 = vmul.f32 %v70, %v49
    %v83 = vmul.f32 %v70, %v50
    %v84 = vmul.f32 %v70, %v51
    %v85 = vmul.f32 %v70, %v52
    %v86 = vmul.f32 %v70, %v53
    %v87 = vmul.f32 %v70, %v54
    %v88 = vmul.f32 %v70, %v55
    %v89 = vmul.f32 %v70, %v56
    %v90 = vmul.f32 %v70, %v57
    %v91 = vmul.f32 %v70, %v58
    %v92 = vmul.f32 %v70, %v59
    %v93 = vmul.f32 %v70, %v60
    %v94 = vmul.f32 %v70, %v61
    %v95 = vmul.f32 %v70, %v62
    %v96 = vmul.f32 %v70, %v63
    %v97 = vmul.f32 %v70, %v64
    %v98 = vmul.f32 %v70, %v65
    %v99 = vstv %s31
    %v100 = vmul.f32 %v99, %v40
    %v101 = vmul.f32 %v99, %v41
    %v102 = vmul.f32 %v99, %v42
    %v103 = vmul.f32 %v99, %v43
    %v104 = vmul.f32 %v99, %v44
    %v105 = vmul.f32 %v99, %v45
    %v106 = vmul.f32 %v99, %v46
    %v107 = vmul.f32 %v99, %v47
    %v108 = vmul.f32 %v99, %v48
    %v109 = vmul.f32 %v99, %v49
    %v110 = vmul.f32 %v99, %v50
    %v111 = vmul.f32 %v99, %v51
    %v112 = vmul.f32 %v99, %v52
    %v113 = vmul.f32 %v99, %v53
    %v114 = vmul.f32 %v99, %v54
    %v115 = vmul.f32 %v99, %v55
    %v116 = vmul.f32 %v99, %v56
    %v117 = vmul.f32 %v99, %v57
    %v118 = vmul.f32 %v99, %v58
    %v119 = vmul.f32 %v99, %v59
    %v120 = vmul.f32 %v99, %v60
    %v121 = vmul.f32 %v99, %v61
    %v122 = vmul.f32 %v99, %v62
    %v123 = vmul.f32 %v99, %v63
    %v124 = vmul.f32 %v99, %v64
    %v125 = vmul.f32 %v99, %v65
    %v126 = vmul.f32 %v99, %v66
    %v127 = vmul.f32 %v99, %v67
    %v128 = vadd.f32 %v71, %v100
    %v129 = vadd.f32 %v72, %v101
    %v130 = vadd.f32 %v73, %v102
    %v131 = vadd.f32 %v74, %v103
    %v132 = vadd.f32 %v75, %v104
    %v133 = vadd.f32 %v76, %v105
    %v134 = vadd.f32 %v77, %v106
    %v135 = vadd.f32 %v78, %v107
    %v136 = vadd.f32 %v79, %v108
    %v137 = vadd.f32 %v80, %v109
    %v138 = vadd.f32 %v81, %v110
    %v139 = vadd.f32 %v82, %v111
    %v140 = vadd.f32 %v83, %v112
    %v141 = vadd.f32 %v84, %v113
    %v142 = vadd.f32 %v85, %v114
    %v143 = vadd.f32 %v86, %v115
    %v144 = vadd.f32 %v87, %v116
    %v145 = vadd.f32 %v88, %v117
    %v146 = vadd.f32 %v89, %v118
    %v147 = vadd.f32 %v90, %v119
    %v148 = vadd.f32 %v91, %v120
    %v149 = vadd.f32 %v92, %v121
    %v150 = vadd.f32 %v93, %v122
    %v151 = vadd.f32 %v94, %v123
    %v152 = vadd.f32 %v95, %v124
    %v153 = vadd.f32 %v96, %v125
    %v154 = vadd.f32 %v97, %v126
    %v155 = vadd.f32 %v98, %v127
    %v156 = vstv %s34
    %v157 = vmul.f32 %v156, %v42
    %v158 = vmul.f32 %v156, %v43
    %v159 = vmul.f32 %v156, %v44
    %v160 = vmul.f32 %v156, %v45
    %v161 = vmul.f32 %v156, %v46
    %v162 = vmul.f32 %v156, %v47
    %v163 = vmul.f32 %v156, %v48
    %v164 = vmul.f32 %v156, %v49
    %v165 = vmul.f32 %v156, %v50
    %v166 = vmul.f32 %v156, %v51
    %v167 = vmul.f32 %v156, %v52
    %v168 = vmul.f32 %v156, %v53
    %v169 = vmul.f32 %v156, %v54
    %v170 = vmul.f32 %v156, %v55
    %v171 = vmul.f32 %v156, %v56
    %v172 = vmul.f32 %v156, %v57
    %v173 = vmul.f32 %v156, %v58
    %v174 = vmul.f32 %v156, %v59
    %v175 = vmul.f32 %v156, %v60
    %v176 = vmul.f32 %v156, %v61
    %v177 = vmul.f32 %v156, %v62
    %v178 = vmul.f32 %v156, %v63
    %v179 = vmul.f32 %v156, %v64
    %v180 = vmul.f32 %v156, %v65
    %v181 = vmul.f32 %v156, %v66
    %v182 = vmul.f32 %v156, %v67
    %v183 = vmul.f32 %v156, %v68
    %v184 = vmul.f32 %v156, %v69
    %v185 = vadd.f32 %v128, %v157
    %v186 = vadd.f32 %v129, %v158
    %v187 = vadd.f32 %v130, %v159
    %v188 = vadd.f32 %v131, %v160
    %v189 = vadd.f32 %v132, %v161
    %v190 = vadd.f32 %v133, %v162
    %v191 = vadd.f32 %v134, %v163
    %v192 = vadd.f32 %v135, %v164
    %v193 = vadd.f32 %v136, %v165
    %v194 = vadd.f32 %v137, %v166
    %v195 = vadd.f32 %v138, %v167
    %v196 = vadd.f32 %v139, %v168
    %v197 = vadd.f32 %v140, %v169
    %v198 = vadd.f32 %v141, %v170
    %v199 = vadd.f32 %v142, %v171
    %v200 = vadd.f32 %v143, %v172
    %v201 = vadd.f32 %v144, %v173
    %v202 = vadd.f32 %v145, %v174
    %v203 = vadd.f32 %v146, %v175
    %v204 = vadd.f32 %v147, %v176
    %v205 = vadd.f32 %v148, %v177
    %v206 = vadd.f32 %v149, %v178
    %v207 = vadd.f32 %v150, %v179
    %v208 = vadd.f32 %v151, %v180
    %v209 = vadd.f32 %v152, %v181
    %v210 = vadd.f32 %v153, %v182
    %v211 = vadd.f32 %v154, %v183
    %v212 = vadd.f32 %v155, %v184
    %v213 = vld [vmem:[%s0 + $0x1] sm:$0xff]
    %v214 = vld [vmem:[%s0 + $0x9] sm:$0x3f]
    %v215 = vld [vmem:[%s0 + $0x11] sm:$0xff]
    %v216 = vld [vmem:[%s0 + $0x19] sm:$0x3f]
    %v217 = vld [vmem:[%s0 + $0x21] sm:$0xff]
    %v218 = vld [vmem:[%s0 + $0x29] sm:$0x3f]
    %v219 = vld [vmem:[%s0 + $0x31] sm:$0xff]
    %v220 = vld [vmem:[%s0 + $0x39] sm:$0x3f]
    %v221 = vld [vmem:[%s0 + $0x41] sm:$0xff]
    %v222 = vld [vmem:[%s0 + $0x49] sm:$0x3f]
    %v223 = vld [vmem:[%s0 + $0x51] sm:$0xff]
    %v224 = vld [vmem:[%s0 + $0x59] sm:$0x3f]
    %v225 = vld [vmem:[%s0 + $0x61] sm:$0xff]
    %v226 = vld [vmem:[%s0 + $0x69] sm:$0x3f]
    %v227 = vld [vmem:[%s0 + $0x71] sm:$0xff]
    %v228 = vld [vmem:[%s0 + $0x79] sm:$0x3f]
    %v229 = vld [vmem:[%s0 + $0x81] sm:$0xff]
    %v230 = vld [vmem:[%s0 + $0x89] sm:$0x3f]
    %v231 = vld [vmem:[%s0 + $0x91] sm:$0xff]
    %v232 = vld [vmem:[%s0 + $0x99] sm:$0x3f]
    %v233 = vld [vmem:[%s0 + $0xa1] sm:$0xff]
    %v234 = vld [vmem:[%s0 + $0xa9] sm:$0x3f]
    %v235 = vld [vmem:[%s0 + $0xb1] sm:$0xff]
    %v236 = vld [vmem:[%s0 + $0xb9] sm:$0x3f]
    %v237 = vld [vmem:[%s0 + $0xc1] sm:$0xff]
    %v238 = vld [vmem:[%s0 + $0xc9] sm:$0x3f]
    %v239 = vld [vmem:[%s0 + $0xd1] sm:$0xff]
    %v240 = vld [vmem:[%s0 + $0xd9] sm:$0x3f]
    %v241 = vld [vmem:[%s0 + $0xe1] sm:$0xff]
    %v242 = vld [vmem:[%s0 + $0xe9] sm:$0x3f]
    %v243 = vld [vmem:[%s0 + $0xf1] sm:$0xff]
    %v244 = vld [vmem:[%s0 + $0xf9] sm:$0x3f]
    %v245 = vstv %s29
    %v246 = vmul.f32 %v245, %v213
    %v247 = vmul.f32 %v245, %v214
    %v248 = vmul.f32 %v245, %v215
    %v249 = vmul.f32 %v245, %v216
    %v250 = vmul.f32 %v245, %v217
    %v251 = vmul.f32 %v245, %v218
    %v252 = vmul.f32 %v245, %v219
    %v253 = vmul.f32 %v245, %v220
    %v254 = vmul.f32 %v245, %v221
    %v255 = vmul.f32 %v245, %v222
    %v256 = vmul.f32 %v245, %v223
    %v257 = vmul.f32 %v245, %v224
    %v258 = vmul.f32 %v245, %v225
    %v259 = vmul.f32 %v245, %v226
    %v260 = vmul.f32 %v245, %v227
    %v261 = vmul.f32 %v245, %v228
    %v262 = vmul.f32 %v245, %v229
    %v263 = vmul.f32 %v245, %v230
    %v264 = vmul.f32 %v245, %v231
    %v265 = vmul.f32 %v245, %v232
    %v266 = vmul.f32 %v245, %v233
    %v267 = vmul.f32 %v245, %v234
    %v268 = vmul.f32 %v245, %v235
    %v269 = vmul.f32 %v245, %v236
    %v270 = vmul.f32 %v245, %v237
    %v271 = vmul.f32 %v245, %v238
    %v272 = vmul.f32 %v245, %v239
    %v273 = vmul.f32 %v245, %v240
    %v274 = vadd.f32 %v185, %v246
    %v275 = vadd.f32 %v186, %v247
    %v276 = vadd.f32 %v187, %v248
    %v277 = vadd.f32 %v188, %v249
    %v278 = vadd.f32 %v189, %v250
    %v279 = vadd.f32 %v190, %v251
    %v280 = vadd.f32 %v191, %v252
    %v281 = vadd.f32 %v192, %v253
    %v282 = vadd.f32 %v193, %v254
    %v283 = vadd.f32 %v194, %v255
    %v284 = vadd.f32 %v195, %v256
    %v285 = vadd.f32 %v196, %v257
    %v286 = vadd.f32 %v197, %v258
    %v287 = vadd.f32 %v198, %v259
    %v288 = vadd.f32 %v199, %v260
    %v289 = vadd.f32 %v200, %v261
    %v290 = vadd.f32 %v201, %v262
    %v291 = vadd.f32 %v202, %v263
    %v292 = vadd.f32 %v203, %v264
    %v293 = vadd.f32 %v204, %v265
    %v294 = vadd.f32 %v205, %v266
    %v295 = vadd.f32 %v206, %v267
    %v296 = vadd.f32 %v207, %v268
    %v297 = vadd.f32 %v208, %v269
    %v298 = vadd.f32 %v209, %v270
    %v299 = vadd.f32 %v210, %v271
    %v300 = vadd.f32 %v211, %v272
    %v301 = vadd.f32 %v212, %v273
    %v302 = vstv %s32
    %v303 = vmul.f32 %v302, %v215
    %v304 = vmul.f32 %v302, %v216
    %v305 = vmul.f32 %v302, %v217
    %v306 = vmul.f32 %v302, %v218
    %v307 = vmul.f32 %v302, %v219
    %v308 = vmul.f32 %v302, %v220
    %v309 = vmul.f32 %v302, %v221
    %v310 = vmul.f32 %v302, %v222
    %v311 = vmul.f32 %v302, %v223
    %v312 = vmul.f32 %v302, %v224
    %v313 = vmul.f32 %v302, %v225
    %v314 = vmul.f32 %v302, %v226
    %v315 = vmul.f32 %v302, %v227
    %v316 = vmul.f32 %v302, %v228
    %v317 = vmul.f32 %v302, %v229
    %v318 = vmul.f32 %v302, %v230
    %v319 = vmul.f32 %v302, %v231
    %v320 = vmul.f32 %v302, %v232
    %v321 = vmul.f32 %v302, %v233
    %v322 = vmul.f32 %v302, %v234
    %v323 = vmul.f32 %v302, %v235
    %v324 = vmul.f32 %v302, %v236
    %v325 = vmul.f32 %v302, %v237
    %v326 = vmul.f32 %v302, %v238
    %v327 = vmul.f32 %v302, %v239
    %v328 = vmul.f32 %v302, %v240
    %v329 = vmul.f32 %v302, %v241
    %v330 = vmul.f32 %v302, %v242
    %v331 = vadd.f32 %v274, %v303
    %v332 = vadd.f32 %v275, %v304
    %v333 = vadd.f32 %v276, %v305
    %v334 = vadd.f32 %v277, %v306
    %v335 = vadd.f32 %v278, %v307
    %v336 = vadd.f32 %v279, %v308
    %v337 = vadd.f32 %v280, %v309
    %v338 = vadd.f32 %v281, %v310
    %v339 = vadd.f32 %v282, %v311
    %v340 = vadd.f32 %v283, %v312
    %v341 = vadd.f32 %v284, %v313
    %v342 = vadd.f32 %v285, %v314
    %v343 = vadd.f32 %v286, %v315
    %v344 = vadd.f32 %v287, %v316
    %v345 = vadd.f32 %v288, %v317
    %v346 = vadd.f32 %v289, %v318
    %v347 = vadd.f32 %v290, %v319
    %v348 = vadd.f32 %v291, %v320
    %v349 = vadd.f32 %v292, %v321
    %v350 = vadd.f32 %v293, %v322
    %v351 = vadd.f32 %v294, %v323
    %v352 = vadd.f32 %v295, %v324
    %v353 = vadd.f32 %v296, %v325
    %v354 = vadd.f32 %v297, %v326
    %v355 = vadd.f32 %v298, %v327
    %v356 = vadd.f32 %v299, %v328
    %v357 = vadd.f32 %v300, %v329
    %v358 = vadd.f32 %v301, %v330
    %v359 = vstv %s35
    %v360 = vmul.f32 %v359, %v217
    %v361 = vmul.f32 %v359, %v218
    %v362 = vmul.f32 %v359, %v219
    %v363 = vmul.f32 %v359, %v220
    %v364 = vmul.f32 %v359, %v221
    %v365 = vmul.f32 %v359, %v222
    %v366 = vmul.f32 %v359, %v223
    %v367 = vmul.f32 %v359, %v224
    %v368 = vmul.f32 %v359, %v225
    %v369 = vmul.f32 %v359, %v226
    %v370 = vmul.f32 %v359, %v227
    %v371 = vmul.f32 %v359, %v228
    %v372 = vmul.f32 %v359, %v229
    %v373 = vmul.f32 %v359, %v230
    %v374 = vmul.f32 %v359, %v231
    %v375 = vmul.f32 %v359, %v232
    %v376 = vmul.f32 %v359, %v233
    %v377 = vmul.f32 %v359, %v234
    %v378 = vmul.f32 %v359, %v235
    %v379 = vmul.f32 %v359, %v236
    %v380 = vmul.f32 %v359, %v237
    %v381 = vmul.f32 %v359, %v238
    %v382 = vmul.f32 %v359, %v239
    %v383 = vmul.f32 %v359, %v240
    %v384 = vmul.f32 %v359, %v241
    %v385 = vmul.f32 %v359, %v242
    %v386 = vmul.f32 %v359, %v243
    %v387 = vmul.f32 %v359, %v244
    %v388 = vadd.f32 %v331, %v360
    %v389 = vadd.f32 %v332, %v361
    %v390 = vadd.f32 %v333, %v362
    %v391 = vadd.f32 %v334, %v363
    %v392 = vadd.f32 %v335, %v364
    %v393 = vadd.f32 %v336, %v365
    %v394 = vadd.f32 %v337, %v366
    %v395 = vadd.f32 %v338, %v367
    %v396 = vadd.f32 %v339, %v368
    %v397 = vadd.f32 %v340, %v369
    %v398 = vadd.f32 %v341, %v370
    %v399 = vadd.f32 %v342, %v371
    %v400 = vadd.f32 %v343, %v372
    %v401 = vadd.f32 %v344, %v373
    %v402 = vadd.f32 %v345, %v374
    %v403 = vadd.f32 %v346, %v375
    %v404 = vadd.f32 %v347, %v376
    %v405 = vadd.f32 %v348, %v377
    %v406 = vadd.f32 %v349, %v378
    %v407 = vadd.f32 %v350, %v379
    %v408 = vadd.f32 %v351, %v380
    %v409 = vadd.f32 %v352, %v381
    %v410 = vadd.f32 %v353, %v382
    %v411 = vadd.f32 %v354, %v383
    %v412 = vadd.f32 %v355, %v384
    %v413 = vadd.f32 %v356, %v385
    %v414 = vadd.f32 %v357, %v386
    %v415 = vadd.f32 %v358, %v387
    %v416 = vld [vmem:[%s0 + $0x2] sm:$0xff]
    %v417 = vld [vmem:[%s0 + $0xa] sm:$0x3f]
    %v418 = vld [vmem:[%s0 + $0x12] sm:$0xff]
    %v419 = vld [vmem:[%s0 + $0x1a] sm:$0x3f]
    %v420 = vld [vmem:[%s0 + $0x22] sm:$0xff]
    %v421 = vld [vmem:[%s0 + $0x2a] sm:$0x3f]
    %v422 = vld [vmem:[%s0 + $0x32] sm:$0xff]
    %v423 = vld [vmem:[%s0 + $0x3a] sm:$0x3f]
    %v424 = vld [vmem:[%s0 + $0x42] sm:$0xff]
    %v425 = vld [vmem:[%s0 + $0x4a] sm:$0x3f]
    %v426 = vld [vmem:[%s0 + $0x52] sm:$0xff]
    %v427 = vld [vmem:[%s0 + $0x5a] sm:$0x3f]
    %v428 = vld [vmem:[%s0 + $0x62] sm:$0xff]
    %v429 = vld [vmem:[%s0 + $0x6a] sm:$0x3f]
    %v430 = vld [vmem:[%s0 + $0x72] sm:$0xff]
    %v431 = vld [vmem:[%s0 + $0x7a] sm:$0x3f]
    %v432 = vld [vmem:[%s0 + $0x82] sm:$0xff]
    %v433 = vld [vmem:[%s0 + $0x8a] sm:$0x3f]
    %v434 = vld [vmem:[%s0 + $0x92] sm:$0xff]
    %v435 = vld [vmem:[%s0 + $0x9a] sm:$0x3f]
    %v436 = vld [vmem:[%s0 + $0xa2] sm:$0xff]
    %v437 = vld [vmem:[%s0 + $0xaa] sm:$0x3f]
    %v438 = vld [vmem:[%s0 + $0xb2] sm:$0xff]
    %v439 = vld [vmem:[%s0 + $0xba] sm:$0x3f]
    %v440 = vld [vmem:[%s0 + $0xc2] sm:$0xff]
    %v441 = vld [vmem:[%s0 + $0xca] sm:$0x3f]
    %v442 = vld [vmem:[%s0 + $0xd2] sm:$0xff]
    %v443 = vld [vmem:[%s0 + $0xda] sm:$0x3f]
    %v444 = vld [vmem:[%s0 + $0xe2] sm:$0xff]
    %v445 = vld [vmem:[%s0 + $0xea] sm:$0x3f]
    %v446 = vld [vmem:[%s0 + $0xf2] sm:$0xff]
    %v447 = vld [vmem:[%s0 + $0xfa] sm:$0x3f]
    %v448 = vstv %s30
    %v449 = vmul.f32 %v448, %v416
    %v450 = vmul.f32 %v448, %v417
    %v451 = vmul.f32 %v448, %v418
    %v452 = vmul.f32 %v448, %v419
    %v453 = vmul.f32 %v448, %v420
    %v454 = vmul.f32 %v448, %v421
    %v455 = vmul.f32 %v448, %v422
    %v456 = vmul.f32 %v448, %v423
    %v457 = vmul.f32 %v448, %v424
    %v458 = vmul.f32 %v448, %v425
    %v459 = vmul.f32 %v448, %v426
    %v460 = vmul.f32 %v448, %v427
    %v461 = vmul.f32 %v448, %v428
    %v462 = vmul.f32 %v448, %v429
    %v463 = vmul.f32 %v448, %v430
    %v464 = vmul.f32 %v448, %v431
    %v465 = vmul.f32 %v448, %v432
    %v466 = vmul.f32 %v448, %v433
    %v467 = vmul.f32 %v448, %v434
    %v468 = vmul.f32 %v448, %v435
    %v469 = vmul.f32 %v448, %v436
    %v470 = vmul.f32 %v448, %v437
    %v471 = vmul.f32 %v448, %v438
    %v472 = vmul.f32 %v448, %v439
    %v473 = vmul.f32 %v448, %v440
    %v474 = vmul.f32 %v448, %v441
    %v475 = vmul.f32 %v448, %v442
    %v476 = vmul.f32 %v448, %v443
    %v477 = vadd.f32 %v388, %v449
    %v478 = vadd.f32 %v389, %v450
    %v479 = vadd.f32 %v390, %v451
    %v480 = vadd.f32 %v391, %v452
    %v481 = vadd.f32 %v392, %v453
    %v482 = vadd.f32 %v393, %v454
    %v483 = vadd.f32 %v394, %v455
    %v484 = vadd.f32 %v395, %v456
    %v485 = vadd.f32 %v396, %v457
    %v486 = vadd.f32 %v397, %v458
    %v487 = vadd.f32 %v398, %v459
    %v488 = vadd.f32 %v399, %v460
    %v489 = vadd.f32 %v400, %v461
    %v490 = vadd.f32 %v401, %v462
    %v491 = vadd.f32 %v402, %v463
    %v492 = vadd.f32 %v403, %v464
    %v493 = vadd.f32 %v404, %v465
    %v494 = vadd.f32 %v405, %v466
    %v495 = vadd.f32 %v406, %v467
    %v496 = vadd.f32 %v407, %v468
    %v497 = vadd.f32 %v408, %v469
    %v498 = vadd.f32 %v409, %v470
    %v499 = vadd.f32 %v410, %v471
    %v500 = vadd.f32 %v411, %v472
    %v501 = vadd.f32 %v412, %v473
    %v502 = vadd.f32 %v413, %v474
    %v503 = vadd.f32 %v414, %v475
    %v504 = vadd.f32 %v415, %v476
    %v505 = vstv %s33
    %v506 = vmul.f32 %v505, %v418
    %v507 = vmul.f32 %v505, %v419
    %v508 = vmul.f32 %v505, %v420
    %v509 = vmul.f32 %v505, %v421
    %v510 = vmul.f32 %v505, %v422
    %v511 = vmul.f32 %v505, %v423
    %v512 = vmul.f32 %v505, %v424
    %v513 = vmul.f32 %v505, %v425
    %v514 = vmul.f32 %v505, %v426
    %v515 = vmul.f32 %v505, %v427
    %v516 = vmul.f32 %v505, %v428
    %v517 = vmul.f32 %v505, %v429
    %v518 = vmul.f32 %v505, %v430
    %v519 = vmul.f32 %v505, %v431
    %v520 = vmul.f32 %v505, %v432
    %v521 = vmul.f32 %v505, %v433
    %v522 = vmul.f32 %v505, %v434
    %v523 = vmul.f32 %v505, %v435
    %v524 = vmul.f32 %v505, %v436
    %v525 = vmul.f32 %v505, %v437
    %v526 = vmul.f32 %v505, %v438
    %v527 = vmul.f32 %v505, %v439
    %v528 = vmul.f32 %v505, %v440
    %v529 = vmul.f32 %v505, %v441
    %v530 = vmul.f32 %v505, %v442
    %v531 = vmul.f32 %v505, %v443
    %v532 = vmul.f32 %v505, %v444
    %v533 = vmul.f32 %v505, %v445
    %v534 = vadd.f32 %v477, %v506
    %v535 = vadd.f32 %v478, %v507
    %v536 = vadd.f32 %v479, %v508
    %v537 = vadd.f32 %v480, %v509
    %v538 = vadd.f32 %v481, %v510
    %v539 = vadd.f32 %v482, %v511
    %v540 = vadd.f32 %v483, %v512
    %v541 = vadd.f32 %v484, %v513
    %v542 = vadd.f32 %v485, %v514
    %v543 = vadd.f32 %v486, %v515
    %v544 = vadd.f32 %v487, %v516
    %v545 = vadd.f32 %v488, %v517
    %v546 = vadd.f32 %v489, %v518
    %v547 = vadd.f32 %v490, %v519
    %v548 = vadd.f32 %v491, %v520
    %v549 = vadd.f32 %v492, %v521
    %v550 = vadd.f32 %v493, %v522
    %v551 = vadd.f32 %v494, %v523
    %v552 = vadd.f32 %v495, %v524
    %v553 = vadd.f32 %v496, %v525
    %v554 = vadd.f32 %v497, %v526
    %v555 = vadd.f32 %v498, %v527
    %v556 = vadd.f32 %v499, %v528
    %v557 = vadd.f32 %v500, %v529
    %v558 = vadd.f32 %v501, %v530
    %v559 = vadd.f32 %v502, %v531
    %v560 = vadd.f32 %v503, %v532
    %v561 = vadd.f32 %v504, %v533
    %v562 = vstv %s36
    %v563 = vmul.f32 %v562, %v420
    %v564 = vmul.f32 %v562, %v421
    %v565 = vmul.f32 %v562, %v422
    %v566 = vmul.f32 %v562, %v423
    %v567 = vmul.f32 %v562, %v424
    %v568 = vmul.f32 %v562, %v425
    %v569 = vmul.f32 %v562, %v426
    %v570 = vmul.f32 %v562, %v427
    %v571 = vmul.f32 %v562, %v428
    %v572 = vmul.f32 %v562, %v429
    %v573 = vmul.f32 %v562, %v430
    %v574 = vmul.f32 %v562, %v431
    %v575 = vmul.f32 %v562, %v432
    %v576 = vmul.f32 %v562, %v433
    %v577 = vmul.f32 %v562, %v434
    %v578 = vmul.f32 %v562, %v435
    %v579 = vmul.f32 %v562, %v436
    %v580 = vmul.f32 %v562, %v437
    %v581 = vmul.f32 %v562, %v438
    %v582 = vmul.f32 %v562, %v439
    %v583 = vmul.f32 %v562, %v440
    %v584 = vmul.f32 %v562, %v441
    %v585 = vmul.f32 %v562, %v442
    %v586 = vmul.f32 %v562, %v443
    %v587 = vmul.f32 %v562, %v444
    %v588 = vmul.f32 %v562, %v445
    %v589 = vmul.f32 %v562, %v446
    %v590 = vmul.f32 %v562, %v447
    %v591 = vadd.f32 %v534, %v563
    %v592 = vadd.f32 %v535, %v564
    %v593 = vadd.f32 %v536, %v565
    %v594 = vadd.f32 %v537, %v566
    %v595 = vadd.f32 %v538, %v567
    %v596 = vadd.f32 %v539, %v568
    %v597 = vadd.f32 %v540, %v569
    %v598 = vadd.f32 %v541, %v570
    %v599 = vadd.f32 %v542, %v571
    %v600 = vadd.f32 %v543, %v572
    %v601 = vadd.f32 %v544, %v573
    %v602 = vadd.f32 %v545, %v574
    %v603 = vadd.f32 %v546, %v575
    %v604 = vadd.f32 %v547, %v576
    %v605 = vadd.f32 %v548, %v577
    %v606 = vadd.f32 %v549, %v578
    %v607 = vadd.f32 %v550, %v579
    %v608 = vadd.f32 %v551, %v580
    %v609 = vadd.f32 %v552, %v581
    %v610 = vadd.f32 %v553, %v582
    %v611 = vadd.f32 %v554, %v583
    %v612 = vadd.f32 %v555, %v584
    %v613 = vadd.f32 %v556, %v585
    %v614 = vadd.f32 %v557, %v586
    %v615 = vadd.f32 %v558, %v587
    %v616 = vadd.f32 %v559, %v588
    %v617 = vadd.f32 %v560, %v589
    %v618 = vadd.f32 %v561, %v590
    %v619 = vstv %s37
    %v620 = vadd.f32 %v591, %v619
    %v621 = vadd.f32 %v592, %v619
    %v622 = vadd.f32 %v593, %v619
    %v623 = vadd.f32 %v594, %v619
    %v624 = vadd.f32 %v595, %v619
    %v625 = vadd.f32 %v596, %v619
    %v626 = vadd.f32 %v597, %v619
    %v627 = vadd.f32 %v598, %v619
    %v628 = vadd.f32 %v599, %v619
    %v629 = vadd.f32 %v600, %v619
    %v630 = vadd.f32 %v601, %v619
    %v631 = vadd.f32 %v602, %v619
    %v632 = vadd.f32 %v603, %v619
    %v633 = vadd.f32 %v604, %v619
    %v634 = vadd.f32 %v605, %v619
    %v635 = vadd.f32 %v606, %v619
    %v636 = vadd.f32 %v607, %v619
    %v637 = vadd.f32 %v608, %v619
    %v638 = vadd.f32 %v609, %v619
    %v639 = vadd.f32 %v610, %v619
    %v640 = vadd.f32 %v611, %v619
    %v641 = vadd.f32 %v612, %v619
    %v642 = vadd.f32 %v613, %v619
    %v643 = vadd.f32 %v614, %v619
    %v644 = vadd.f32 %v615, %v619
    %v645 = vadd.f32 %v616, %v619
    %v646 = vadd.f32 %v617, %v619
    %v647 = vadd.f32 %v618, %v619
    %648 = vst [vmem:[%s3] sm:$0xff] %v620
    %649 = vst [vmem:[%s3 + $0x8] sm:$0x3f] %v621
    %650 = vst [vmem:[%s3 + $0x10] sm:$0xff] %v622
    %651 = vst [vmem:[%s3 + $0x18] sm:$0x3f] %v623
    %652 = vst [vmem:[%s3 + $0x20] sm:$0xff] %v624
    %653 = vst [vmem:[%s3 + $0x28] sm:$0x3f] %v625
    %654 = vst [vmem:[%s3 + $0x30] sm:$0xff] %v626
    %655 = vst [vmem:[%s3 + $0x38] sm:$0x3f] %v627
    %656 = vst [vmem:[%s3 + $0x40] sm:$0xff] %v628
    %657 = vst [vmem:[%s3 + $0x48] sm:$0x3f] %v629
    %658 = vst [vmem:[%s3 + $0x50] sm:$0xff] %v630
    %659 = vst [vmem:[%s3 + $0x58] sm:$0x3f] %v631
    %660 = vst [vmem:[%s3 + $0x60] sm:$0xff] %v632
    %661 = vst [vmem:[%s3 + $0x68] sm:$0x3f] %v633
    %662 = vst [vmem:[%s3 + $0x70] sm:$0xff] %v634
    %663 = vst [vmem:[%s3 + $0x78] sm:$0x3f] %v635
    %664 = vst [vmem:[%s3 + $0x80] sm:$0xff] %v636
    %665 = vst [vmem:[%s3 + $0x88] sm:$0x3f] %v637
    %666 = vst [vmem:[%s3 + $0x90] sm:$0xff] %v638
    %667 = vst [vmem:[%s3 + $0x98] sm:$0x3f] %v639
    %668 = vst [vmem:[%s3 + $0xa0] sm:$0xff] %v640
    %669 = vst [vmem:[%s3 + $0xa8] sm:$0x3f] %v641
    %670 = vst [vmem:[%s3 + $0xb0] sm:$0xff] %v642
    %671 = vst [vmem:[%s3 + $0xb8] sm:$0x3f] %v643
    %672 = vst [vmem:[%s3 + $0xc0] sm:$0xff] %v644
    %673 = vst [vmem:[%s3 + $0xc8] sm:$0x3f] %v645
    %674 = vst [vmem:[%s3 + $0xd0] sm:$0xff] %v646
    %675 = vst [vmem:[%s3 + $0xd8] sm:$0x3f] %v647
    // Predicated region
    $region18: #{my_model3_forward.1} parent=1 // pred_check
      _
    $region19: #{my_model3_forward.1} parent=1 // pred_check_branch
      %677 = sbr.rel (0) target = $region21
    $region20: #{my_model3_forward.1} parent=1 // pred_region
      _
    $region21: #{my_model3_forward.1} parent=1 // pred_fallthru
      _
    // Predicated region
    $region22: #{my_model3_forward.1} parent=1 // pred_check
      _
    $region23: #{my_model3_forward.1} parent=1 // pred_check_branch
      %679 = sbr.rel (0) target = $region25
    $region24: #{my_model3_forward.1} parent=1 // pred_region
      _
    $region25: #{my_model3_forward.1} parent=1 // pred_fallthru
      _
    %680 = vsyncpa [#allocation4], 1

</llo_original>
